<compile_context>
chip_gen: v6e
topology: v6e:2x2x1
jax: 0.10.0
libtpu: 0.0.40
codegen_flags: <defaults>
</compile_context>

<pallas_src>
import functools
from functools import partial

import jax
import jax.numpy as jnp
from jax.experimental import pallas as pl
from jax.experimental.pallas import tpu as pltpu


# ----------------------------------------------------------------------------
# Hardware queries (generation-aware sizing)
# ----------------------------------------------------------------------------
@functools.lru_cache(maxsize=None)
def _vmem_capacity_bytes():
    try:
        info = pltpu.get_tpu_info()
        for attr in ("vmem_capacity_bytes", "vmem_bytes", "vmem_size_bytes"):
            v = getattr(info, attr, None)
            if v:
                return int(v)
    except Exception:
        pass
    return 128 * 1024 * 1024  # v5e/v6e default


@functools.lru_cache(maxsize=None)
def _is_dual_tensorcore():
    # v7x has 2 TensorCores per chip; v5e/v6e have 1.
    try:
        kind = (getattr(jax.devices()[0], "device_kind", "") or "").lower()
        return "v7" in kind
    except Exception:
        return False


def _plan_row_tiles(hw, per_row_bytes, resident_bytes, vmem_limit, dual_core):
    """Pick (num_row_tiles, rows_per_tile).

    Prefers tiles that divide hw exactly (no padding, no ragged block) and are
    as large as the VMEM budget allows.  On dual-TC parts (v7x) prefers an even
    number of tiles >= 2 so the 'parallel' grid axis shards evenly across both
    cores; on single-TC parts (v5e/v6e) a single large tile is preferred."""
    budget = max(int(vmem_limit * 0.8) - resident_bytes, 2 * 1024 * 1024)
    max_tm = max(8, budget // max(per_row_bytes, 1))
    want_split = dual_core and hw >= 128
    for n in range(1, hw + 1):
        if hw % n:
            continue
        tm = hw // n
        if n > 1 and tm % 8:
            continue
        if tm > max_tm:
            continue
        if want_split and (n < 2 or n % 2):
            continue
        return n, tm
    # Fallback: ragged last block (Pallas masks it); never jnp.pad the big arrays.
    tm = min(hw, max(8, (max_tm // 8) * 8))
    return pl.cdiv(hw, tm), tm


# ----------------------------------------------------------------------------
# Pallas kernel:  out = ReLU(x @ W_direct + kron @ zsrc + bias)
# ----------------------------------------------------------------------------
def _spm_bottleneck_kernel(x_ref, w_ref, kron_ref, z_ref, b_ref, o_ref):
    # Direct branch of the concat: (tm, C) bf16 @ (C, Cout_pad) bf16, f32 acc.
    acc = jnp.dot(x_ref[0], w_ref[...], preferred_element_type=jnp.float32)
    # Stage branches: bilinear-upsample + sum reconstructed as one tiny matmul.
    acc = acc + jnp.dot(kron_ref[...], z_ref[0],
                        preferred_element_type=jnp.float32)
    acc = acc + b_ref[...]                      # (1, Cout_pad) broadcast
    o_ref[0] = jnp.maximum(acc, 0.0).astype(o_ref.dtype)


def _fused_bottleneck(x3, w_direct, kron, zsrc, bias2d):
    """x3:(N,HW,C) bf16, w_direct:(C,O) bf16, kron:(HW,K) f32,
    zsrc:(N,K,O) f32, bias2d:(1,O) f32  ->  (N,HW,O) bf16."""
    N, HW, C = x3.shape
    K = kron.shape[1]
    O = w_direct.shape[1]
    assert O % 128 == 0, "output columns must be lane-dense (padded to 128)"

    vmem_cap = _vmem_capacity_bytes()
    vmem_limit = min(vmem_cap * 3 // 4, 100 * 1024 * 1024)
    dual_core = _is_dual_tensorcore()

    # Streamed per-row bytes (double buffered): x (bf16) + kron (f32) + out (bf16)
    per_row = 2 * (C * 2 + K * 4 + O * 2)
    # Resident refs (weight bf16, zsrc f32, bias f32), counted with 2 buffers.
    resident = 2 * (C * O * 2 + K * O * 4 + O * 4)
    n_tiles, tm = _plan_row_tiles(HW, per_row, resident, vmem_limit, dual_core)

    grid = (N, n_tiles)
    cost = pl.CostEstimate(
        flops=2 * N * HW * (C + K) * O,
        transcendentals=0,
        bytes_accessed=(N * HW * C * 2 + N * HW * O * 2 + N * HW * K * 4
                        + N * K * O * 4 + C * O * 2 + O * 4))

    return pl.pallas_call(
        _spm_bottleneck_kernel,
        out_shape=jax.ShapeDtypeStruct((N, HW, O), jnp.bfloat16),
        grid_spec=pltpu.PrefetchScalarGridSpec(
            num_scalar_prefetch=0,
            grid=grid,
            in_specs=[
                pl.BlockSpec((1, tm, C), lambda n, r: (n, r, 0)),   # x rows
                pl.BlockSpec((C, O), lambda n, r: (0, 0)),          # weight (resident)
                pl.BlockSpec((tm, K), lambda n, r: (r, 0)),         # bilinear weights
                pl.BlockSpec((1, K, O), lambda n, r: (n, 0, 0)),    # stage values (per n)
                pl.BlockSpec((1, O), lambda n, r: (0, 0)),          # bias
            ],
            out_specs=pl.BlockSpec((1, tm, O), lambda n, r: (n, r, 0)),
        ),
        compiler_params=pltpu.CompilerParams(
            dimension_semantics=("parallel", "parallel"),
            vmem_limit_bytes=int(vmem_limit),
        ),
        cost_estimate=cost,
    )(x3, w_direct, kron, zsrc, bias2d)


# ----------------------------------------------------------------------------
# Glue math (tiny, stays in XLA), channels-last
# ----------------------------------------------------------------------------
def _pool_matrix(in_size, out_size):
    """Segment-mean matrix (out_size, in_size) matching AdaptiveAvgPool2d."""
    i = jnp.arange(out_size)
    start = (i * in_size) // out_size
    end = -((-(i + 1) * in_size) // out_size)          # ceil((i+1)*in/out)
    pos = jnp.arange(in_size)
    mask = (pos[None, :] >= start[:, None]) & (pos[None, :] < end[:, None])
    return mask.astype(jnp.float32) / (end - start)[:, None].astype(jnp.float32)


def adaptive_avg_pool_nhwc(x, out_size):
    """torch.nn.AdaptiveAvgPool2d((s, s)) on NHWC, via two pooling matmuls."""
    Lh = _pool_matrix(x.shape[1], out_size)             # (s, H)
    Lw = _pool_matrix(x.shape[2], out_size)             # (s, W)
    t = jnp.einsum("nhwc,ih->niwc", x, Lh)
    return jnp.einsum("niwc,jw->nijc", t, Lw)           # (N, s, s, C)


def _interp_matrix(out_size, in_size):
    """(out_size, in_size) 1-D bilinear matrix, align_corners=False (PyTorch)."""
    scale = in_size / out_size
    d = jnp.arange(out_size, dtype=jnp.float32)
    src = jnp.maximum((d + 0.5) * scale - 0.5, 0.0)
    i0 = jnp.minimum(jnp.floor(src).astype(jnp.int32), in_size - 1)
    i1 = jnp.minimum(i0 + 1, in_size - 1)
    lam = src - i0.astype(jnp.float32)
    m0 = jax.nn.one_hot(i0, in_size, dtype=jnp.float32) * (1.0 - lam)[:, None]
    m1 = jax.nn.one_hot(i1, in_size, dtype=jnp.float32) * lam[:, None]
    return m0 + m1


def upsample_bilinear_nhwc(x, out_h, out_w):
    """Reference-only: F.interpolate(mode='bilinear', align_corners=False)."""
    N, h, w, C = x.shape

    def src_idx(out_size, in_size):
        scale = in_size / out_size
        d = jnp.arange(out_size, dtype=jnp.float32)
        src = jnp.maximum((d + 0.5) * scale - 0.5, 0.0)
        i0 = jnp.minimum(jnp.floor(src).astype(jnp.int32), in_size - 1)
        i1 = jnp.minimum(i0 + 1, in_size - 1)
        return i0, i1, src - i0.astype(jnp.float32)

    y0, y1, ly = src_idx(out_h, h)
    x0, x1, lx = src_idx(out_w, w)
    top, bot = x[:, y0, :, :], x[:, y1, :, :]
    v00, v01 = top[:, :, x0, :], top[:, :, x1, :]
    v10, v11 = bot[:, :, x0, :], bot[:, :, x1, :]
    ly = ly[None, :, None, None]
    lx = lx[None, None, :, None]
    return (v00 * (1 - ly) * (1 - lx) + v01 * (1 - ly) * lx
            + v10 * ly * (1 - lx) + v11 * ly * lx)


# ----------------------------------------------------------------------------
# Parameters (PyTorch-equivalent shapes; weights stored as (Cin, Cout))
# ----------------------------------------------------------------------------
def spm_init(key, features, out_features, sizes):
    keys = jax.random.split(key, len(sizes) + 2)
    stage_w = [0.1 * jax.random.normal(keys[i], (features, features),
                                       dtype=jnp.float32)
               for i in range(len(sizes))]
    cin = features * (len(sizes) + 1)
    bottleneck_w = 0.1 * jax.random.normal(keys[-2], (cin, out_features),
                                           dtype=jnp.float32)
    bottleneck_b = 0.1 * jax.random.normal(keys[-1], (out_features,),
                                           dtype=jnp.float32)
    return {"stage_w": stage_w,
            "bottleneck_w": bottleneck_w,
            "bottleneck_b": bottleneck_b}


# ----------------------------------------------------------------------------
# SPM forward: algebraic fusion + single Pallas hot path
# ----------------------------------------------------------------------------
def spm_forward(feats, params, sizes=(1, 2, 3, 6)):
    N, C, H, W = feats.shape
    n_stages = len(sizes)
    HW = H * W
    Cout = params["bottleneck_w"].shape[1]
    Cout_pad = pl.cdiv(Cout, 128) * 128                 # lane-dense output cols

    x = jnp.transpose(feats, (0, 2, 3, 1))              # NCHW -> NHWC once

    wb = params["bottleneck_w"]                         # (5C, Cout)
    bb = params["bottleneck_b"]
    if Cout_pad != Cout:                                # pad weights only (tiny)
        wb = jnp.pad(wb, ((0, 0), (0, Cout_pad - Cout)))
        bb = jnp.pad(bb, ((0, Cout_pad - Cout),))

    # Direct (identity) branch of the concat -> last C rows of bottleneck weight.
    w_direct = wb[n_stages * C:, :].astype(jnp.bfloat16)          # (C, Cout_pad)

    # Stage branches: fold 1x1 conv into the bottleneck slice, evaluate at the
    # pooled resolution, and build the tiny in-kernel reconstruction operands.
    z_blocks, kron_blocks = [], []
    for idx, s in enumerate(sizes):
        w_fold = params["stage_w"][idx] @ wb[idx * C:(idx + 1) * C, :]  # (C, O)
        pooled = adaptive_avg_pool_nhwc(x, s)                           # (N,s,s,C)
        y = jnp.einsum("nijc,co->nijo", pooled, w_fold)                 # (N,s,s,O)
        z_blocks.append(y.reshape(N, s * s, Cout_pad))
        rh = _interp_matrix(H, s)                                       # (H, s)
        rw = _interp_matrix(W, s)                                       # (W, s)
        kron_blocks.append(jnp.einsum("ip,jq->ijpq", rh, rw).reshape(HW, s * s))
    zsrc = jnp.concatenate(z_blocks, axis=1).astype(jnp.float32)   # (N, K0, O)
    kron = jnp.concatenate(kron_blocks, axis=1).astype(jnp.float32)  # (HW, K0)

    # Pad the tiny contraction dim (sum s^2 = 50) to a multiple of 8.
    K0 = zsrc.shape[1]
    K = pl.cdiv(K0, 8) * 8
    if K != K0:
        zsrc = jnp.pad(zsrc, ((0, 0), (0, K - K0), (0, 0)))
        kron = jnp.pad(kron, ((0, 0), (0, K - K0)))

    x3 = x.reshape(N, HW, C).astype(jnp.bfloat16)
    bias2d = bb.reshape(1, Cout_pad).astype(jnp.float32)

    out3 = _fused_bottleneck(x3, w_direct, kron, zsrc, bias2d)     # (N,HW,O) bf16

    # Slice before transpose, stay bf16 through the layout change; final cast
    # back to the input dtype only to match the PyTorch module's output (a
    # consumer that accepts NHWC/bf16/padded-Cout can skip all three ops).
    out = out3[..., :Cout].reshape(N, H, W, Cout)
    out = jnp.transpose(out, (0, 3, 1, 2))                          # NHWC -> NCHW
    return out.astype(feats.dtype)


# ----------------------------------------------------------------------------
# Pure-JAX reference (unfused, mirrors the PyTorch module; no Pallas)
# ----------------------------------------------------------------------------
def spm_forward_ref(feats, params, sizes=(1, 2, 3, 6)):
    N, C, H, W = feats.shape
    x = jnp.transpose(feats, (0, 2, 3, 1))
    priors = []
    for idx, s in enumerate(sizes):
        pooled = adaptive_avg_pool_nhwc(x, s)
        y = jnp.einsum("nijc,co->nijo", pooled, params["stage_w"][idx])
        priors.append(upsample_bilinear_nhwc(y, H, W))
    priors.append(x)
    cat = jnp.concatenate(priors, axis=-1)              # (N, H, W, 5C)
    out = jnp.einsum("nhwc,co->nhwo", cat, params["bottleneck_w"])
    out = jnp.maximum(out + params["bottleneck_b"], 0.0)
    return jnp.transpose(out, (0, 3, 1, 2))


if __name__ == "__main__":
    # Small shapes consistent with the module: features=4, out_features=32
    N, C, H, W = 2, 4, 16, 16
    out_features = 32
    sizes = (1, 2, 3, 6)

    key = jax.random.PRNGKey(0)
    k_x, k_p = jax.random.split(key)
    feats = jax.random.normal(k_x, (N, C, H, W), dtype=jnp.float32)
    params = spm_init(k_p, C, out_features, sizes)

    fwd = jax.jit(partial(spm_forward, sizes=sizes))
    out = jax.block_until_ready(fwd(feats, params))
    assert out.shape == (N, out_features, H, W), out.shape

    ref = jax.block_until_ready(spm_forward_ref(feats, params, sizes))
    # bf16 MXU operands / bf16 output -> relaxed tolerance vs. the f32 reference
    max_err = float(jnp.max(jnp.abs(out - ref)))
    assert jnp.allclose(out, ref, atol=2e-2, rtol=2e-2), max_err

    print("KERNEL_OK")
</pallas_src>

<mosaic_0001>
module attributes {stable_mosaic.version = 11 : i64} {
  func.func @_spm_bottleneck_kernel(%arg0: i32, %arg1: i32, %arg2: memref<1x256x4xbf16, #tpu.memory_space<vmem>>, %arg3: memref<4x128xbf16, #tpu.memory_space<vmem>>, %arg4: memref<256x56xf32, #tpu.memory_space<vmem>>, %arg5: memref<1x56x128xf32, #tpu.memory_space<vmem>>, %arg6: memref<1x128xf32, #tpu.memory_space<vmem>>, %arg7: memref<1x256x128xbf16, #tpu.memory_space<vmem>>) attributes {dimension_semantics = [#tpu.dimension_semantics<parallel>, #tpu.dimension_semantics<parallel>], iteration_bounds = array<i64: 2, 1>, scalar_prefetch = 0 : i64, scratch_operands = 0 : i64, tpu.core_type = #tpu.core_type<tc>, window_params = [{transform_indices = @transform_0, window_bounds = array<i64: 1, 256, 4>}, {pipeline_mode = #tpu.pipeline_mode<synchronous>, transform_indices = @transform_1, window_bounds = array<i64: 4, 128>}, {transform_indices = @transform_2, window_bounds = array<i64: 256, 56>}, {transform_indices = @transform_3, window_bounds = array<i64: 1, 56, 128>}, {pipeline_mode = #tpu.pipeline_mode<synchronous>, transform_indices = @transform_4, window_bounds = array<i64: 1, 128>}, {transform_indices = @transform_5, window_bounds = array<i64: 1, 256, 128>}]} {
    %c0 = arith.constant 0 : index
    %c0_0 = arith.constant 0 : index
    %c0_1 = arith.constant 0 : index
    %0 = vector.load %arg2[%c0, %c0_0, %c0_1] : memref<1x256x4xbf16, #tpu.memory_space<vmem>>, vector<1x256x4xbf16>
    %1 = vector.shape_cast %0 : vector<1x256x4xbf16> to vector<256x4xbf16>
    %c0_2 = arith.constant 0 : index
    %c0_3 = arith.constant 0 : index
    %2 = vector.load %arg3[%c0_2, %c0_3] : memref<4x128xbf16, #tpu.memory_space<vmem>>, vector<4x128xbf16>
    %cst = arith.constant dense<0.000000e+00> : vector<256x128xf32>
    %3 = tpu.matmul %1, %2, %cst {dimension_numbers = #tpu.dot_dimension_numbers<[1], [0], [0], [1], [0, 0, 1, 1], [], []>} : vector<256x4xbf16>, vector<4x128xbf16>, vector<256x128xf32> -> vector<256x128xf32>
    %c0_4 = arith.constant 0 : index
    %c0_5 = arith.constant 0 : index
    %4 = vector.load %arg4[%c0_4, %c0_5] : memref<256x56xf32, #tpu.memory_space<vmem>>, vector<256x56xf32>
    %c0_6 = arith.constant 0 : index
    %c0_7 = arith.constant 0 : index
    %c0_8 = arith.constant 0 : index
    %5 = vector.load %arg5[%c0_6, %c0_7, %c0_8] : memref<1x56x128xf32, #tpu.memory_space<vmem>>, vector<1x56x128xf32>
    %6 = vector.shape_cast %5 : vector<1x56x128xf32> to vector<56x128xf32>
    %cst_9 = arith.constant dense<0.000000e+00> : vector<256x128xf32>
    %7 = tpu.matmul %4, %6, %cst_9 {dimension_numbers = #tpu.dot_dimension_numbers<[1], [0], [0], [1], [0, 0, 1, 1], [], []>} : vector<256x56xf32>, vector<56x128xf32>, vector<256x128xf32> -> vector<256x128xf32>
    %8 = arith.addf %3, %7 : vector<256x128xf32>
    %c0_10 = arith.constant 0 : index
    %c0_11 = arith.constant 0 : index
    %9 = vector.load %arg6[%c0_10, %c0_11] : memref<1x128xf32, #tpu.memory_space<vmem>>, vector<1x128xf32>
    %10 = vector.broadcast %9 : vector<1x128xf32> to vector<256x128xf32>
    %11 = arith.addf %8, %10 : vector<256x128xf32>
    %cst_12 = arith.constant 0.000000e+00 : f32
    %12 = vector.broadcast %cst_12 : f32 to vector<256x128xf32>
    %13 = arith.maximumf %11, %12 : vector<256x128xf32>
    %14 = arith.truncf %13 : vector<256x128xf32> to vector<256x128xbf16>
    %c0_13 = arith.constant 0 : index
    %c0_14 = arith.constant 0 : index
    %c0_15 = arith.constant 0 : index
    %15 = vector.load %arg7[%c0_13, %c0_14, %c0_15] : memref<1x256x128xbf16, #tpu.memory_space<vmem>>, vector<1x256x128xbf16>
    %16 = vector.shape_cast %15 : vector<1x256x128xbf16> to vector<256x128xbf16>
    %17 = vector.shape_cast %14 : vector<256x128xbf16> to vector<1x256x128xbf16>
    tpu.vector_store %arg7[%c0_13, %c0_14, %c0_15], %17 {strides = array<i32>} : memref<1x256x128xbf16, #tpu.memory_space<vmem>>, vector<1x256x128xbf16>,
    return
  }
  func.func @transform_0(%arg0: i32, %arg1: i32) -> (i32, i32, i32) {
    %c0_i32 = arith.constant 0 : i32
    %c0_i32_0 = arith.constant 0 : i32
    return %arg0, %arg1, %c0_i32 : i32, i32, i32
  }
  func.func @transform_1(%arg0: i32, %arg1: i32) -> (i32, i32) {
    %c0_i32 = arith.constant 0 : i32
    %c0_i32_0 = arith.constant 0 : i32
    %c0_i32_1 = arith.constant 0 : i32
    return %c0_i32, %c0_i32_0 : i32, i32
  }
  func.func @transform_2(%arg0: i32, %arg1: i32) -> (i32, i32) {
    %c0_i32 = arith.constant 0 : i32
    %c0_i32_0 = arith.constant 0 : i32
    return %arg1, %c0_i32 : i32, i32
  }
  func.func @transform_3(%arg0: i32, %arg1: i32) -> (i32, i32, i32) {
    %c0_i32 = arith.constant 0 : i32
    %c0_i32_0 = arith.constant 0 : i32
    %c0_i32_1 = arith.constant 0 : i32
    return %arg0, %c0_i32, %c0_i32_0 : i32, i32, i32
  }
  func.func @transform_4(%arg0: i32, %arg1: i32) -> (i32, i32) {
    %c0_i32 = arith.constant 0 : i32
    %c0_i32_0 = arith.constant 0 : i32
    %c0_i32_1 = arith.constant 0 : i32
    return %c0_i32, %c0_i32_0 : i32, i32
  }
  func.func @transform_5(%arg0: i32, %arg1: i32) -> (i32, i32, i32) {
    %c0_i32 = arith.constant 0 : i32
    %c0_i32_0 = arith.constant 0 : i32
    return %arg0, %arg1, %c0_i32 : i32, i32, i32
  }
}

</mosaic_0001>

<llo_original>
// kernel: spm_forward.1
$region0: #{spm_forward.1}
  #allocation0 [shape = 'u32[]', space=smem, size = 0x4, offset = 0x4, fixed_abs, tag = 'smem constant byte address 0x4 - core index']
  #allocation1 [shape = 'u32[144,128]{1,0:T(1,128)}', space=vmem, size = 0x12000, scoped, tag = 'internal scratch']
  %s0 = inlined_call_operand.vmem [shape: bf16[2,256,4], index: 0, kind: input, shape index: {}]
  %s1 = inlined_call_operand.vmem [shape: bf16[4,128], index: 1, kind: input, shape index: {}]
  %s2 = inlined_call_operand.vmem [shape: f32[256,56], index: 2, kind: input, shape index: {}]
  %s3 = inlined_call_operand.vmem [shape: f32[2,56,128], index: 3, kind: input, shape index: {}]
  %s4 = inlined_call_operand.vmem [shape: f32[1,128], index: 4, kind: input, shape index: {}]
  %s5 = inlined_call_operand.vmem [shape: bf16[2,256,128], index: 5, kind: output, shape index: {}]
  %s6 = sld [smem:[#allocation0]]
  $region53: #{spm_forward.1} parent=0
    _
  %s8 = ssub.s32 1, %s6
  %s9 = scalar_select 0, %s8, %s6
  loop: start=0, step=1, limit=4
  $region2: #{spm_forward.1} parent=0 // loop_pre_header
    _
  $region3: #{spm_forward.1} parent=0 // loop_header
    %s11 = sphi 0, %s15
    %p12 = scmp.ge.s32.totalorder %s11, 4
    %s18 = sphi 0, %s30
    %s19 = sphi 0, %s26
    %s20 = sphi 0, %s18
    %s21 = sphi 0, %s19
    %s22 = sphi 0, %s20
    %s23 = sphi 0, %s21
    %s35 = sphi 0, %s37
    %s38 = sphi 0, %s35
    %s39 = sphi 0, %s38
    %s55 = sphi 0, %s39
    %s59 = sphi 0, %s59
    %s61 = sphi 0, %s59
    %s62 = sphi 0, %s61
    %s76 = sphi 0, %s62
    %s82 = sphi 0, %s84
    %s85 = sphi 0, %s82
    %s86 = sphi 0, %s85
    %s102 = sphi 0, %s86
    %s108 = sphi 0, %s110
    %s111 = sphi 0, %s108
    %s112 = sphi 0, %s111
    %s128 = sphi 0, %s112
    %s132 = sphi 0, %s132
    %s134 = sphi 0, %s132
    %s135 = sphi 0, %s134
    %s149 = sphi 0, %s135
    %s157 = sphi 0, %s159
    %s160 = sphi 0, %s157
    %s161 = sphi 0, %s160
    %s177 = sphi 0, %s161
  $region4: #{spm_forward.1} parent=0 // loop_header_branch
    %14 = sbr.rel (%p12) target = $region8
  $region5: #{spm_forward.1} parent=0 // loop_body
    %s16 = ssub.s32 %s11, 1
    %s17 = ssub.s32 %s11, 2
    %s24 = sadd.s32 1, %s19
    %p25 = scmp.ge.s32.totalorder %s24, 1
    %s26 = scalar_select %p25, 0, %s24
    %s27 = sadd.s32 1, %s18
    %s28 = scalar_select %p25, %s27, %s18
    %p29 = scmp.ge.s32.totalorder %s28, 2
    %s30 = scalar_select %p29, 0, %s28
    %s31 = ssub.s32 %s18, %s30
    %s32 = ssub.s32 %s19, %s26
    %s33 = sor.u32 %s31, %s32
    %p34 = scmp.eq.s32.totalorder %s33, 0
    %s36 = sadd.s32 %s35, 1
    %s37 = scalar_select %p34, %s35, %s36
    %p40 = pneg %p34
    %p41 = scmp.eq.s32.totalorder %s11, 1
    %p42 = por %p40, %p41
    %p43 = scmp.ne.s32.totalorder %s35, %s38
    %p44 = scmp.eq.s32.totalorder %s11, 0
    %p45 = por %p43, %p44
    %p46 = scmp.ne.s32.totalorder %s35, %s38
    %p47 = scmp.eq.s32.totalorder %s16, 1
    %p48 = por %p46, %p47
    %p49 = scmp.ne.s32.totalorder %s38, %s39
    %p50 = scmp.eq.s32.totalorder %s16, 0
    %p51 = por %p49, %p50
    %p52 = scmp.ne.s32.totalorder %s38, %s39
    %p53 = scmp.eq.s32.totalorder %s17, 1
    %p54 = por %p52, %p53
    %p56 = scmp.ne.s32.totalorder %s39, %s55
    %p57 = scmp.eq.s32.totalorder %s17, 0
    %p58 = por %p56, %p57
    %s60 = sadd.s32 %s59, 1
    %p63 = scmp.eq.s32.totalorder %s11, 1
    %p64 = scmp.ne.s32.totalorder %s59, %s61
    %p65 = scmp.eq.s32.totalorder %s11, 0
    %p66 = por %p64, %p65
    %p67 = scmp.ne.s32.totalorder %s59, %s61
    %p68 = scmp.eq.s32.totalorder %s16, 1
    %p69 = por %p67, %p68
    %p70 = scmp.ne.s32.totalorder %s61, %s62
    %p71 = scmp.eq.s32.totalorder %s16, 0
    %p72 = por %p70, %p71
    %p73 = scmp.ne.s32.totalorder %s61, %s62
    %p74 = scmp.eq.s32.totalorder %s17, 1
    %p75 = por %p73, %p74
    %p77 = scmp.ne.s32.totalorder %s62, %s76
    %p78 = scmp.eq.s32.totalorder %s17, 0
    %p79 = por %p77, %p78
    %s80 = ssub.s32 %s19, %s26
    %p81 = scmp.eq.s32.totalorder %s80, 0
    %s83 = sadd.s32 %s82, 1
    %s84 = scalar_select %p81, %s82, %s83
    %p87 = pneg %p81
    %p88 = scmp.eq.s32.totalorder %s11, 1
    %p89 = por %p87, %p88
    %p90 = scmp.ne.s32.totalorder %s82, %s85
    %p91 = scmp.eq.s32.totalorder %s11, 0
    %p92 = por %p90, %p91
    %p93 = scmp.ne.s32.totalorder %s82, %s85
    %p94 = scmp.eq.s32.totalorder %s16, 1
    %p95 = por %p93, %p94
    %p96 = scmp.ne.s32.totalorder %s85, %s86
    %p97 = scmp.eq.s32.totalorder %s16, 0
    %p98 = por %p96, %p97
    %p99 = scmp.ne.s32.totalorder %s85, %s86
    %p100 = scmp.eq.s32.totalorder %s17, 1
    %p101 = por %p99, %p100
    %p103 = scmp.ne.s32.totalorder %s86, %s102
    %p104 = scmp.eq.s32.totalorder %s17, 0
    %p105 = por %p103, %p104
    %s106 = ssub.s32 %s18, %s30
    %p107 = scmp.eq.s32.totalorder %s106, 0
    %s109 = sadd.s32 %s108, 1
    %s110 = scalar_select %p107, %s108, %s109
    %p113 = pneg %p107
    %p114 = scmp.eq.s32.totalorder %s11, 1
    %p115 = por %p113, %p114
    %p116 = scmp.ne.s32.totalorder %s108, %s111
    %p117 = scmp.eq.s32.totalorder %s11, 0
    %p118 = por %p116, %p117
    %p119 = scmp.ne.s32.totalorder %s108, %s111
    %p120 = scmp.eq.s32.totalorder %s16, 1
    %p121 = por %p119, %p120
    %p122 = scmp.ne.s32.totalorder %s111, %s112
    %p123 = scmp.eq.s32.totalorder %s16, 0
    %p124 = por %p122, %p123
    %p125 = scmp.ne.s32.totalorder %s111, %s112
    %p126 = scmp.eq.s32.totalorder %s17, 1
    %p127 = por %p125, %p126
    %p129 = scmp.ne.s32.totalorder %s112, %s128
    %p130 = scmp.eq.s32.totalorder %s17, 0
    %p131 = por %p129, %p130
    %s133 = sadd.s32 %s132, 1
    %p136 = scmp.eq.s32.totalorder %s11, 1
    %p137 = scmp.ne.s32.totalorder %s132, %s134
    %p138 = scmp.eq.s32.totalorder %s11, 0
    %p139 = por %p137, %p138
    %p140 = scmp.ne.s32.totalorder %s132, %s134
    %p141 = scmp.eq.s32.totalorder %s16, 1
    %p142 = por %p140, %p141
    %p143 = scmp.ne.s32.totalorder %s134, %s135
    %p144 = scmp.eq.s32.totalorder %s16, 0
    %p145 = por %p143, %p144
    %p146 = scmp.ne.s32.totalorder %s134, %s135
    %p147 = scmp.eq.s32.totalorder %s17, 1
    %p148 = por %p146, %p147
    %p150 = scmp.ne.s32.totalorder %s135, %s149
    %p151 = scmp.eq.s32.totalorder %s17, 0
    %p152 = por %p150, %p151
    %s153 = ssub.s32 %s18, %s30
    %s154 = ssub.s32 %s19, %s26
    %s155 = sor.u32 %s153, %s154
    %p156 = scmp.eq.s32.totalorder %s155, 0
    %s158 = sadd.s32 %s157, 1
    %s159 = scalar_select %p156, %s157, %s158
    %p162 = pneg %p156
    %p163 = scmp.eq.s32.totalorder %s11, 1
    %p164 = por %p162, %p163
    %p165 = scmp.ne.s32.totalorder %s157, %s160
    %p166 = scmp.eq.s32.totalorder %s11, 0
    %p167 = por %p165, %p166
    %p168 = scmp.ne.s32.totalorder %s157, %s160
    %p169 = scmp.eq.s32.totalorder %s16, 1
    %p170 = por %p168, %p169
    %p171 = scmp.ne.s32.totalorder %s160, %s161
    %p172 = scmp.eq.s32.totalorder %s16, 0
    %p173 = por %p171, %p172
    %p174 = scmp.ne.s32.totalorder %s160, %s161
    %p175 = scmp.eq.s32.totalorder %s17, 1
    %p176 = por %p174, %p175
    %p178 = scmp.ne.s32.totalorder %s161, %s177
    %p179 = scmp.eq.s32.totalorder %s17, 0
    %p180 = por %p178, %p179
    %p181 = scmp.le.s32.totalorder 1, %s11
    %p182 = scmp.lt.s32.totalorder %s11, 3
    %p183 = pnand %p181, %p182
    %p184 = pneg %p183
    // Predicated region
    $region9: #{spm_forward.1} parent=5 // pred_check
      _
    $region10: #{spm_forward.1} parent=5 // pred_check_branch
      %186 = sbr.rel (%p183) target = $region12
    $region11: #{spm_forward.1} parent=5 // pred_region
      %s187 = ssub.s32 %s11, 1
      // Predicated region
      $region13: #{spm_forward.1} parent=11 // pred_check
        %p188 = pneg %p72
      $region14: #{spm_forward.1} parent=11 // pred_check_branch
        %190 = sbr.rel (%p188) target = $region16
      $region15: #{spm_forward.1} parent=11 // pred_region
        _
      $region16: #{spm_forward.1} parent=11 // pred_fallthru
        _
      // Predicated region
      $region17: #{spm_forward.1} parent=11 // pred_check
        %p191 = pneg %p98
      $region18: #{spm_forward.1} parent=11 // pred_check_branch
        %193 = sbr.rel (%p191) target = $region20
      $region19: #{spm_forward.1} parent=11 // pred_region
        %s194 = smul.u32 32, %s21
        %p195 = scmp.lt.s32.totalorder %s194, 31
        %s196 = scalar_select %p195, %s194, 31
        %s197 = smul.addr %s196, 8
        %s198 = scalar_lea.vmem %s2, %s197
        %s199 = smul.u32 32, %s21
      $region20: #{spm_forward.1} parent=11 // pred_fallthru
        _
      // Predicated region
      $region21: #{spm_forward.1} parent=11 // pred_check
        %p200 = pneg %p145
      $region22: #{spm_forward.1} parent=11 // pred_check_branch
        %202 = sbr.rel (%p200) target = $region24
      $region23: #{spm_forward.1} parent=11 // pred_region
        _
      $region24: #{spm_forward.1} parent=11 // pred_fallthru
        _
    $region12: #{spm_forward.1} parent=5 // pred_fallthru
      _
    %p203 = scmp.lt.s32.totalorder %s11, 2
    // Predicated region
    $region25: #{spm_forward.1} parent=5 // pred_check
      %p204 = pneg %p203
    $region26: #{spm_forward.1} parent=5 // pred_check_branch
      %206 = sbr.rel (%p204) target = $region28
    $region27: #{spm_forward.1} parent=5 // pred_region
      // Predicated region
      $region29: #{spm_forward.1} parent=27 // pred_check
        %p207 = pneg %p45
      $region30: #{spm_forward.1} parent=27 // pred_check_branch
        %209 = sbr.rel (%p207) target = $region32
      $region31: #{spm_forward.1} parent=27 // pred_region
        %s210 = smul.u32 32, %s19
        %p211 = scmp.lt.s32.totalorder %s18, 1
        %s212 = scalar_select %p211, %s18, 1
        %p213 = scmp.lt.s32.totalorder %s210, 31
        %s214 = scalar_select %p213, %s210, 31
        %s215 = smul.addr %s212, 32
        %s216 = sadd.s32 %s214, %s215
        %s217 = smul.addr %s216, 4
        %s218 = scalar_lea.vmem %s0, %s217
        %s219 = smul.u32 32, %s19
      $region32: #{spm_forward.1} parent=27 // pred_fallthru
        _
      // Predicated region
      $region33: #{spm_forward.1} parent=27 // pred_check
        %p220 = pneg %p118
      $region34: #{spm_forward.1} parent=27 // pred_check_branch
        %222 = sbr.rel (%p220) target = $region36
      $region35: #{spm_forward.1} parent=27 // pred_region
        %p223 = scmp.lt.s32.totalorder %s18, 1
        %s224 = scalar_select %p223, %s18, 1
        %s225 = smul.addr %s224, 7
        %s226 = smul.addr %s225, 8
        %s227 = scalar_lea.vmem %s3, %s226
      $region36: #{spm_forward.1} parent=27 // pred_fallthru
        _
    $region28: #{spm_forward.1} parent=5 // pred_fallthru
      _
    %p228 = scmp.le.s32.totalorder 1, %s11
    %p229 = scmp.lt.s32.totalorder %s11, 3
    %p230 = pnand %p228, %p229
    %p231 = pneg %p230
    // Predicated region
    $region37: #{spm_forward.1} parent=5 // pred_check
      _
    $region38: #{spm_forward.1} parent=5 // pred_check_branch
      %233 = sbr.rel (%p230) target = $region40
    $region39: #{spm_forward.1} parent=5 // pred_region
      %s234 = ssub.s32 %s11, 1
      %s235 = smul.u32 32, %s21
      %p236 = scmp.lt.s32.totalorder %s20, 1
      %s237 = scalar_select %p236, %s20, 1
      %p238 = scmp.lt.s32.totalorder %s235, 31
      %s239 = scalar_select %p238, %s235, 31
      %s240 = smul.addr %s237, 32
      %s241 = sadd.s32 %s239, %s240
      %s242 = smul.addr %s241, 4
      %s243 = scalar_lea.vmem %s0, %s242
      %p244 = pneg %p51
      %p245 = pneg %p48
      %p246 = pneg %p72
      %p247 = pneg %p69
      %s248 = smul.u32 32, %s21
      %p249 = scmp.lt.s32.totalorder %s248, 31
      %s250 = scalar_select %p249, %s248, 31
      %s251 = smul.addr %s250, 8
      %s252 = scalar_lea.vmem %s2, %s251
      %p253 = pneg %p98
      %p254 = pneg %p95
      %p255 = scmp.lt.s32.totalorder %s20, 1
      %s256 = scalar_select %p255, %s20, 1
      %s257 = smul.addr %s256, 7
      %s258 = smul.addr %s257, 8
      %s259 = scalar_lea.vmem %s3, %s258
      %p260 = pneg %p124
      %p261 = pneg %p121
      %p262 = pneg %p145
      %p263 = pneg %p142
      %p264 = pneg %p173
      %p265 = pneg %p170
      %s266 = smul.u32 32, %s21
      %p267 = scmp.lt.s32.totalorder %s20, 1
      %s268 = scalar_select %p267, %s20, 1
      %p269 = scmp.lt.s32.totalorder %s266, 31
      %s270 = scalar_select %p269, %s266, 31
      %s271 = smul.addr %s268, 32
      %s272 = sadd.s32 %s270, %s271
      %s273 = smul.addr %s272, 4
      %s274 = scalar_lea.vmem %s5, %s273
      %s275 = smul.u32 32, %s21
      %p276 = scmp.lt.s32.totalorder %s20, 1
      %s277 = scalar_select %p276, %s20, 1
      %p278 = scmp.lt.s32.totalorder %s275, 31
      %s279 = scalar_select %p278, %s275, 31
      %s280 = smul.addr %s277, 32
      %s281 = sadd.s32 %s279, %s280
      %s282 = smul.addr %s281, 4
      %s283 = scalar_lea.vmem %s0, %s282
      %s284 = smul.u32 32, %s21
      %s285 = smul.u32 32, %s21
      %p286 = scmp.lt.s32.totalorder %s285, 31
      %s287 = scalar_select %p286, %s285, 31
      %s288 = smul.addr %s287, 8
      %s289 = scalar_lea.vmem %s2, %s288
      %s290 = smul.u32 32, %s21
      %p291 = scmp.lt.s32.totalorder %s20, 1
      %s292 = scalar_select %p291, %s20, 1
      %s293 = smul.addr %s292, 7
      %s294 = smul.addr %s293, 8
      %s295 = scalar_lea.vmem %s3, %s294
      %s296 = smul.u32 32, %s21
      %p297 = scmp.lt.s32.totalorder %s20, 1
      %s298 = scalar_select %p297, %s20, 1
      %p299 = scmp.lt.s32.totalorder %s296, 31
      %s300 = scalar_select %p299, %s296, 31
      %s301 = smul.addr %s298, 32
      %s302 = sadd.s32 %s300, %s301
      %s303 = smul.addr %s302, 4
      %s304 = scalar_lea.vmem %s5, %s303
      %s305 = smul.u32 32, %s21
      %v307 = vld [vmem:[%s283] sm:$0xf]
      %v308 = vld [vmem:[%s283 + $0x4] sm:$0xf]
      %v309 = vld [vmem:[%s283 + $0x8] sm:$0xf]
      %v310 = vld [vmem:[%s283 + $0xc] sm:$0xf]
      %v311 = vld [vmem:[%s283 + $0x10] sm:$0xf]
      %v312 = vld [vmem:[%s283 + $0x14] sm:$0xf]
      %v313 = vld [vmem:[%s283 + $0x18] sm:$0xf]
      %v314 = vld [vmem:[%s283 + $0x1c] sm:$0xf]
      %v315 = vld [vmem:[%s283 + $0x20] sm:$0xf]
      %v316 = vld [vmem:[%s283 + $0x24] sm:$0xf]
      %v317 = vld [vmem:[%s283 + $0x28] sm:$0xf]
      %v318 = vld [vmem:[%s283 + $0x2c] sm:$0xf]
      %v319 = vld [vmem:[%s283 + $0x30] sm:$0xf]
      %v320 = vld [vmem:[%s283 + $0x34] sm:$0xf]
      %v321 = vld [vmem:[%s283 + $0x38] sm:$0xf]
      %v322 = vld [vmem:[%s283 + $0x3c] sm:$0xf]
      %v323 = vld [vmem:[%s283 + $0x40] sm:$0xf]
      %v324 = vld [vmem:[%s283 + $0x44] sm:$0xf]
      %v325 = vld [vmem:[%s283 + $0x48] sm:$0xf]
      %v326 = vld [vmem:[%s283 + $0x4c] sm:$0xf]
      %v327 = vld [vmem:[%s283 + $0x50] sm:$0xf]
      %v328 = vld [vmem:[%s283 + $0x54] sm:$0xf]
      %v329 = vld [vmem:[%s283 + $0x58] sm:$0xf]
      %v330 = vld [vmem:[%s283 + $0x5c] sm:$0xf]
      %v331 = vld [vmem:[%s283 + $0x60] sm:$0xf]
      %v332 = vld [vmem:[%s283 + $0x64] sm:$0xf]
      %v333 = vld [vmem:[%s283 + $0x68] sm:$0xf]
      %v334 = vld [vmem:[%s283 + $0x6c] sm:$0xf]
      %v335 = vld [vmem:[%s283 + $0x70] sm:$0xf]
      %v336 = vld [vmem:[%s283 + $0x74] sm:$0xf]
      %v337 = vld [vmem:[%s283 + $0x78] sm:$0xf]
      %v338 = vld [vmem:[%s283 + $0x7c] sm:$0xf]
      %v339 = vld [vmem:[%s1] sm:$0x3]
      %v340 = vld [vmem:[%s289] sm:$0xff]
      %v341 = vld [vmem:[%s289 + $0x8] sm:$0xff]
      %v342 = vld [vmem:[%s289 + $0x10] sm:$0xff]
      %v343 = vld [vmem:[%s289 + $0x18] sm:$0xff]
      %v344 = vld [vmem:[%s289 + $0x20] sm:$0xff]
      %v345 = vld [vmem:[%s289 + $0x28] sm:$0xff]
      %v346 = vld [vmem:[%s289 + $0x30] sm:$0xff]
      %v347 = vld [vmem:[%s289 + $0x38] sm:$0xff]
      %v348 = vld [vmem:[%s289 + $0x40] sm:$0xff]
      %v349 = vld [vmem:[%s289 + $0x48] sm:$0xff]
      %v350 = vld [vmem:[%s289 + $0x50] sm:$0xff]
      %v351 = vld [vmem:[%s289 + $0x58] sm:$0xff]
      %v352 = vld [vmem:[%s289 + $0x60] sm:$0xff]
      %v353 = vld [vmem:[%s289 + $0x68] sm:$0xff]
      %v354 = vld [vmem:[%s289 + $0x70] sm:$0xff]
      %v355 = vld [vmem:[%s289 + $0x78] sm:$0xff]
      %v356 = vld [vmem:[%s289 + $0x80] sm:$0xff]
      %v357 = vld [vmem:[%s289 + $0x88] sm:$0xff]
      %v358 = vld [vmem:[%s289 + $0x90] sm:$0xff]
      %v359 = vld [vmem:[%s289 + $0x98] sm:$0xff]
      %v360 = vld [vmem:[%s289 + $0xa0] sm:$0xff]
      %v361 = vld [vmem:[%s289 + $0xa8] sm:$0xff]
      %v362 = vld [vmem:[%s289 + $0xb0] sm:$0xff]
      %v363 = vld [vmem:[%s289 + $0xb8] sm:$0xff]
      %v364 = vld [vmem:[%s289 + $0xc0] sm:$0xff]
      %v365 = vld [vmem:[%s289 + $0xc8] sm:$0xff]
      %v366 = vld [vmem:[%s289 + $0xd0] sm:$0xff]
      %v367 = vld [vmem:[%s289 + $0xd8] sm:$0xff]
      %v368 = vld [vmem:[%s289 + $0xe0] sm:$0xff]
      %v369 = vld [vmem:[%s289 + $0xe8] sm:$0xff]
      %v370 = vld [vmem:[%s289 + $0xf0] sm:$0xff]
      %v371 = vld [vmem:[%s289 + $0xf8] sm:$0xff]
      %v372 = vld [vmem:[%s295] sm:$0xff]
      %v373 = vld [vmem:[%s295 + $0x8] sm:$0xff]
      %v374 = vld [vmem:[%s295 + $0x10] sm:$0xff]
      %v375 = vld [vmem:[%s295 + $0x18] sm:$0xff]
      %v376 = vld [vmem:[%s295 + $0x20] sm:$0xff]
      %v377 = vld [vmem:[%s295 + $0x28] sm:$0xff]
      %v378 = vld [vmem:[%s295 + $0x30] sm:$0xff]
      %vm379 = vcmask 457728
      %v381 = vsel %vm379, %v340, 0
      %v384 = vsel %vm379, %v341, 0
      %v387 = vsel %vm379, %v342, 0
      %v390 = vsel %vm379, %v343, 0
      %v393 = vsel %vm379, %v344, 0
      %v396 = vsel %vm379, %v345, 0
      %v399 = vsel %vm379, %v346, 0
      %v402 = vsel %vm379, %v347, 0
      %v405 = vsel %vm379, %v348, 0
      %v408 = vsel %vm379, %v349, 0
      %v411 = vsel %vm379, %v350, 0
      %v414 = vsel %vm379, %v351, 0
      %v417 = vsel %vm379, %v352, 0
      %v420 = vsel %vm379, %v353, 0
      %v423 = vsel %vm379, %v354, 0
      %v426 = vsel %vm379, %v355, 0
      %v429 = vsel %vm379, %v356, 0
      %v432 = vsel %vm379, %v357, 0
      %v435 = vsel %vm379, %v358, 0
      %v438 = vsel %vm379, %v359, 0
      %v441 = vsel %vm379, %v360, 0
      %v444 = vsel %vm379, %v361, 0
      %v447 = vsel %vm379, %v362, 0
      %v450 = vsel %vm379, %v363, 0
      %v453 = vsel %vm379, %v364, 0
      %v456 = vsel %vm379, %v365, 0
      %v459 = vsel %vm379, %v366, 0
      %v462 = vsel %vm379, %v367, 0
      %v465 = vsel %vm379, %v368, 0
      %v468 = vsel %vm379, %v369, 0
      %v471 = vsel %vm379, %v370, 0
      %v474 = vsel %vm379, %v371, 0
      %476 = vmatprep.subr.mxu0 0.0
      %477 = vmatpush1.msra.mxu0 0.0
      %478 = vmatprep.subr.mxu0 0.0
      %479 = vmatpush1.msra.mxu0 0.0
      %480 = vmatprep.subr.mxu0 0.0
      %481 = vmatpush1.msra.mxu0 0.0
      %482 = vmatprep.subr.mxu0 0.0
      %483 = vmatpush1.msra.mxu0 0.0
      %484 = vmatprep.subr.mxu0 0.0
      %485 = vmatpush1.msra.mxu0 0.0
      %486 = vmatprep.subr.mxu0 0.0
      %487 = vmatpush1.msra.mxu0 0.0
      %488 = vmatprep.subr.mxu0 0.0
      %489 = vmatpush1.msra.mxu0 0.0
      %490 = vmatprep.subr.mxu0 0.0
      %491 = vmatpush1.msra.mxu0 0.0
      %492 = vmatprep.subr.mxu0 0.0
      %493 = vmatpush1.msra.mxu0 0.0
      %494 = vmatprep.subr.mxu0 0.0
      %495 = vmatpush1.msra.mxu0 %v378
      %496 = vmatprep.subr.mxu0 0.0
      %497 = vmatpush1.msra.mxu0 %v377
      %498 = vmatprep.subr.mxu0 0.0
      %499 = vmatpush1.msra.mxu0 %v376
      %500 = vmatprep.subr.mxu0 0.0
      %501 = vmatpush1.msra.mxu0 %v375
      %502 = vmatprep.subr.mxu0 0.0
      %503 = vmatpush1.msra.mxu0 %v374
      %504 = vmatprep.subr.mxu0 0.0
      %505 = vmatpush1.msra.mxu0 %v373
      %506 = vmatprep.subr.mxu0 0.0
      %507 = vmatpush1.msra.mxu0 %v372
      %508 = vmatprep.subr.mxu0 0.0
      %509 = vmatpush2.msra.mxu0 0.0
      %510 = vmatprep.subr.mxu0 0.0
      %511 = vmatpush2.msra.mxu0 0.0
      %512 = vmatprep.subr.mxu0 0.0
      %513 = vmatpush2.msra.mxu0 0.0
      %514 = vmatprep.subr.mxu0 0.0
      %515 = vmatpush2.msra.mxu0 0.0
      %516 = vmatprep.subr.mxu0 0.0
      %517 = vmatpush2.msra.mxu0 0.0
      %518 = vmatprep.subr.mxu0 0.0
      %519 = vmatpush2.msra.mxu0 0.0
      %520 = vmatprep.subr.mxu0 0.0
      %521 = vmatpush2.msra.mxu0 0.0
      %522 = vmatprep.subr.mxu0 0.0
      %523 = vmatpush2.msra.mxu0 0.0
      %524 = vmatprep.subr.mxu0 0.0
      %525 = vmatpush2.msra.mxu0 0.0
      %526 = vmatprep.subr.mxu0 0.0
      %527 = vmatpush2.msra.mxu0 0.0
      %528 = vmatprep.subr.mxu0 0.0
      %529 = vmatpush2.msra.mxu0 0.0
      %530 = vmatprep.subr.mxu0 0.0
      %531 = vmatpush2.msra.mxu0 0.0
      %532 = vmatprep.subr.mxu0 0.0
      %533 = vmatpush2.msra.mxu0 0.0
      %534 = vmatprep.subr.mxu0 0.0
      %535 = vmatpush2.msra.mxu0 0.0
      %536 = vmatprep.subr.mxu0 0.0
      %537 = vmatpush2.msra.mxu0 0.0
      %538 = vmatprep.subr.mxu0 0.0
      %539 = vmatpush2.msra.mxu0 0.0
      %540 = vmatprep.mubr.f32.mxu0 0.0
      %541 = vmatmul.mubr.f32.gmra.mxu0 %v381
      %v542 = vpop.f32.mrf.mxu0
      %v543 = vadd.f32 0.0, %v542
      %v544 = vpop.f32.mrf.mxu0
      %545 = vmatprep.mubr.f32.mxu0 0.0
      %546 = vmatmul.mubr.f32.gmra.mxu0 %v384
      %v547 = vpop.f32.mrf.mxu0
      %v548 = vadd.f32 0.0, %v547
      %v549 = vpop.f32.mrf.mxu0
      %550 = vmatprep.mubr.f32.mxu0 0.0
      %551 = vmatmul.mubr.f32.gmra.mxu0 %v387
      %v552 = vpop.f32.mrf.mxu0
      %v553 = vadd.f32 0.0, %v552
      %v554 = vpop.f32.mrf.mxu0
      %555 = vmatprep.mubr.f32.mxu0 0.0
      %556 = vmatmul.mubr.f32.gmra.mxu0 %v390
      %v557 = vpop.f32.mrf.mxu0
      %v558 = vadd.f32 0.0, %v557
      %v559 = vpop.f32.mrf.mxu0
      %560 = vmatprep.mubr.f32.mxu0 0.0
      %561 = vmatmul.mubr.f32.gmra.mxu0 %v393
      %v562 = vpop.f32.mrf.mxu0
      %v563 = vadd.f32 0.0, %v562
      %v564 = vpop.f32.mrf.mxu0
      %565 = vmatprep.mubr.f32.mxu0 0.0
      %566 = vmatmul.mubr.f32.gmra.mxu0 %v396
      %v567 = vpop.f32.mrf.mxu0
      %v568 = vadd.f32 0.0, %v567
      %v569 = vpop.f32.mrf.mxu0
      %570 = vmatprep.mubr.f32.mxu0 0.0
      %571 = vmatmul.mubr.f32.gmra.mxu0 %v399
      %v572 = vpop.f32.mrf.mxu0
      %v573 = vadd.f32 0.0, %v572
      %v574 = vpop.f32.mrf.mxu0
      %575 = vmatprep.mubr.f32.mxu0 0.0
      %576 = vmatmul.mubr.f32.gmra.mxu0 %v402
      %v577 = vpop.f32.mrf.mxu0
      %v578 = vadd.f32 0.0, %v577
      %v579 = vpop.f32.mrf.mxu0
      %580 = vmatprep.mubr.f32.mxu0 0.0
      %581 = vmatmul.mubr.f32.gmra.mxu0 %v405
      %v582 = vpop.f32.mrf.mxu0
      %v583 = vadd.f32 0.0, %v582
      %v584 = vpop.f32.mrf.mxu0
      %585 = vmatprep.mubr.f32.mxu0 0.0
      %586 = vmatmul.mubr.f32.gmra.mxu0 %v408
      %v587 = vpop.f32.mrf.mxu0
      %v588 = vadd.f32 0.0, %v587
      %v589 = vpop.f32.mrf.mxu0
      %590 = vmatprep.mubr.f32.mxu0 0.0
      %591 = vmatmul.mubr.f32.gmra.mxu0 %v411
      %v592 = vpop.f32.mrf.mxu0
      %v593 = vadd.f32 0.0, %v592
      %v594 = vpop.f32.mrf.mxu0
      %595 = vmatprep.mubr.f32.mxu0 0.0
      %596 = vmatmul.mubr.f32.gmra.mxu0 %v414
      %v597 = vpop.f32.mrf.mxu0
      %v598 = vadd.f32 0.0, %v597
      %v599 = vpop.f32.mrf.mxu0
      %600 = vmatprep.mubr.f32.mxu0 0.0
      %601 = vmatmul.mubr.f32.gmra.mxu0 %v417
      %v602 = vpop.f32.mrf.mxu0
      %v603 = vadd.f32 0.0, %v602
      %v604 = vpop.f32.mrf.mxu0
      %605 = vmatprep.mubr.f32.mxu0 0.0
      %606 = vmatmul.mubr.f32.gmra.mxu0 %v420
      %v607 = vpop.f32.mrf.mxu0
      %v608 = vadd.f32 0.0, %v607
      %v609 = vpop.f32.mrf.mxu0
      %610 = vmatprep.mubr.f32.mxu0 0.0
      %611 = vmatmul.mubr.f32.gmra.mxu0 %v423
      %v612 = vpop.f32.mrf.mxu0
      %v613 = vadd.f32 0.0, %v612
      %v614 = vpop.f32.mrf.mxu0
      %615 = vmatprep.mubr.f32.mxu0 0.0
      %616 = vmatmul.mubr.f32.gmra.mxu0 %v426
      %v617 = vpop.f32.mrf.mxu0
      %v618 = vadd.f32 0.0, %v617
      %v619 = vpop.f32.mrf.mxu0
      %620 = vmatprep.mubr.f32.mxu0 0.0
      %621 = vmatmul.mubr.f32.gmra.mxu0 %v429
      %v622 = vpop.f32.mrf.mxu0
      %v623 = vadd.f32 0.0, %v622
      %v624 = vpop.f32.mrf.mxu0
      %625 = vmatprep.mubr.f32.mxu0 0.0
      %626 = vmatmul.mubr.f32.gmra.mxu0 %v432
      %v627 = vpop.f32.mrf.mxu0
      %v628 = vadd.f32 0.0, %v627
      %v629 = vpop.f32.mrf.mxu0
      %630 = vmatprep.mubr.f32.mxu0 0.0
      %631 = vmatmul.mubr.f32.gmra.mxu0 %v435
      %v632 = vpop.f32.mrf.mxu0
      %v633 = vadd.f32 0.0, %v632
      %v634 = vpop.f32.mrf.mxu0
      %635 = vmatprep.mubr.f32.mxu0 0.0
      %636 = vmatmul.mubr.f32.gmra.mxu0 %v438
      %v637 = vpop.f32.mrf.mxu0
      %v638 = vadd.f32 0.0, %v637
      %v639 = vpop.f32.mrf.mxu0
      %640 = vmatprep.mubr.f32.mxu0 0.0
      %641 = vmatmul.mubr.f32.gmra.mxu0 %v441
      %v642 = vpop.f32.mrf.mxu0
      %v643 = vadd.f32 0.0, %v642
      %v644 = vpop.f32.mrf.mxu0
      %645 = vmatprep.mubr.f32.mxu0 0.0
      %646 = vmatmul.mubr.f32.gmra.mxu0 %v444
      %v647 = vpop.f32.mrf.mxu0
      %v648 = vadd.f32 0.0, %v647
      %v649 = vpop.f32.mrf.mxu0
      %650 = vmatprep.mubr.f32.mxu0 0.0
      %651 = vmatmul.mubr.f32.gmra.mxu0 %v447
      %v652 = vpop.f32.mrf.mxu0
      %v653 = vadd.f32 0.0, %v652
      %v654 = vpop.f32.mrf.mxu0
      %655 = vmatprep.mubr.f32.mxu0 0.0
      %656 = vmatmul.mubr.f32.gmra.mxu0 %v450
      %v657 = vpop.f32.mrf.mxu0
      %v658 = vadd.f32 0.0, %v657
      %v659 = vpop.f32.mrf.mxu0
      %660 = vmatprep.mubr.f32.mxu0 0.0
      %661 = vmatmul.mubr.f32.gmra.mxu0 %v453
      %v662 = vpop.f32.mrf.mxu0
      %v663 = vadd.f32 0.0, %v662
      %v664 = vpop.f32.mrf.mxu0
      %665 = vmatprep.mubr.f32.mxu0 0.0
      %666 = vmatmul.mubr.f32.gmra.mxu0 %v456
      %v667 = vpop.f32.mrf.mxu0
      %v668 = vadd.f32 0.0, %v667
      %v669 = vpop.f32.mrf.mxu0
      %670 = vmatprep.mubr.f32.mxu0 0.0
      %671 = vmatmul.mubr.f32.gmra.mxu0 %v459
      %v672 = vpop.f32.mrf.mxu0
      %v673 = vadd.f32 0.0, %v672
      %v674 = vpop.f32.mrf.mxu0
      %675 = vmatprep.mubr.f32.mxu0 0.0
      %676 = vmatmul.mubr.f32.gmra.mxu0 %v462
      %v677 = vpop.f32.mrf.mxu0
      %v678 = vadd.f32 0.0, %v677
      %v679 = vpop.f32.mrf.mxu0
      %680 = vmatprep.mubr.f32.mxu0 0.0
      %681 = vmatmul.mubr.f32.gmra.mxu0 %v465
      %v682 = vpop.f32.mrf.mxu0
      %v683 = vadd.f32 0.0, %v682
      %v684 = vpop.f32.mrf.mxu0
      %685 = vmatprep.mubr.f32.mxu0 0.0
      %686 = vmatmul.mubr.f32.gmra.mxu0 %v468
      %v687 = vpop.f32.mrf.mxu0
      %v688 = vadd.f32 0.0, %v687
      %v689 = vpop.f32.mrf.mxu0
      %690 = vmatprep.mubr.f32.mxu0 0.0
      %691 = vmatmul.mubr.f32.gmra.mxu0 %v471
      %v692 = vpop.f32.mrf.mxu0
      %v693 = vadd.f32 0.0, %v692
      %v694 = vpop.f32.mrf.mxu0
      %695 = vmatprep.mubr.f32.mxu0 0.0
      %696 = vmatmul.mubr.f32.gmra.mxu0 %v474
      %v697 = vpop.f32.mrf.mxu0
      %v698 = vadd.f32 0.0, %v697
      %v699 = vpop.f32.mrf.mxu0
      %700 = vdwg.mxu0
      %v733 = vunpack.c.l.b16 %v307
      %v734 = vunpack.c.l.b16 %v308
      %v735 = vunpack.c.l.b16 %v309
      %v736 = vunpack.c.l.b16 %v310
      %v737 = vunpack.c.l.b16 %v311
      %v738 = vunpack.c.l.b16 %v312
      %v739 = vunpack.c.l.b16 %v313
      %v740 = vunpack.c.l.b16 %v314
      %v741 = vunpack.c.l.b16 %v315
      %v742 = vunpack.c.l.b16 %v316
      %v743 = vunpack.c.l.b16 %v317
      %v744 = vunpack.c.l.b16 %v318
      %v745 = vunpack.c.l.b16 %v319
      %v746 = vunpack.c.l.b16 %v320
      %v747 = vunpack.c.l.b16 %v321
      %v748 = vunpack.c.l.b16 %v322
      %v749 = vunpack.c.l.b16 %v323
      %v750 = vunpack.c.l.b16 %v324
      %v751 = vunpack.c.l.b16 %v325
      %v752 = vunpack.c.l.b16 %v326
      %v753 = vunpack.c.l.b16 %v327
      %v754 = vunpack.c.l.b16 %v328
      %v755 = vunpack.c.l.b16 %v329
      %v756 = vunpack.c.l.b16 %v330
      %v757 = vunpack.c.l.b16 %v331
      %v758 = vunpack.c.l.b16 %v332
      %v759 = vunpack.c.l.b16 %v333
      %v760 = vunpack.c.l.b16 %v334
      %v761 = vunpack.c.l.b16 %v335
      %v762 = vunpack.c.l.b16 %v336
      %v763 = vunpack.c.l.b16 %v337
      %v764 = vunpack.c.l.b16 %v338
      %v765 = vpack.c.b16 %v734, %v733
      %v766 = vpack.c.b16 %v736, %v735
      %v767 = vpack.c.b16 %v738, %v737
      %v768 = vpack.c.b16 %v740, %v739
      %v769 = vpack.c.b16 %v742, %v741
      %v770 = vpack.c.b16 %v744, %v743
      %v771 = vpack.c.b16 %v746, %v745
      %v772 = vpack.c.b16 %v748, %v747
      %v773 = vpack.c.b16 %v750, %v749
      %v774 = vpack.c.b16 %v752, %v751
      %v775 = vpack.c.b16 %v754, %v753
      %v776 = vpack.c.b16 %v756, %v755
      %v777 = vpack.c.b16 %v758, %v757
      %v778 = vpack.c.b16 %v760, %v759
      %v779 = vpack.c.b16 %v762, %v761
      %v780 = vpack.c.b16 %v764, %v763
      %vm781 = vcmask 31744
      %v783 = vsel %vm781, %v765, 0
      %v786 = vsel %vm781, %v766, 0
      %v789 = vsel %vm781, %v767, 0
      %v792 = vsel %vm781, %v768, 0
      %v795 = vsel %vm781, %v769, 0
      %v798 = vsel %vm781, %v770, 0
      %v801 = vsel %vm781, %v771, 0
      %v804 = vsel %vm781, %v772, 0
      %v807 = vsel %vm781, %v773, 0
      %v810 = vsel %vm781, %v774, 0
      %v813 = vsel %vm781, %v775, 0
      %v816 = vsel %vm781, %v776, 0
      %v819 = vsel %vm781, %v777, 0
      %v822 = vsel %vm781, %v778, 0
      %v825 = vsel %vm781, %v779, 0
      %v828 = vsel %vm781, %v780, 0
      %vm830 = vcmask 1041408
      %v832 = vsel %vm830, %v339, 0
      %834 = vmatprep.subr.bf16.mxu0 0
      %835 = vmatpush1.bf16.msra.mxu0 0
      %836 = vmatprep.subr.bf16.mxu0 0
      %837 = vmatpush1.bf16.msra.mxu0 0
      %838 = vmatprep.subr.bf16.mxu0 0
      %839 = vmatpush1.bf16.msra.mxu0 0
      %840 = vmatprep.subr.bf16.mxu0 0
      %841 = vmatpush1.bf16.msra.mxu0 0
      %842 = vmatprep.subr.bf16.mxu0 0
      %843 = vmatpush1.bf16.msra.mxu0 0
      %844 = vmatprep.subr.bf16.mxu0 0
      %845 = vmatpush1.bf16.msra.mxu0 0
      %846 = vmatprep.subr.bf16.mxu0 0
      %847 = vmatpush1.bf16.msra.mxu0 0
      %848 = vmatprep.subr.bf16.mxu0 0
      %849 = vmatpush1.bf16.msra.mxu0 %v832
      %850 = vmatprep.subr.bf16.mxu0 0
      %851 = vmatpush2.bf16.msra.mxu0 0
      %852 = vmatprep.subr.bf16.mxu0 0
      %853 = vmatpush2.bf16.msra.mxu0 0
      %854 = vmatprep.subr.bf16.mxu0 0
      %855 = vmatpush2.bf16.msra.mxu0 0
      %856 = vmatprep.subr.bf16.mxu0 0
      %857 = vmatpush2.bf16.msra.mxu0 0
      %858 = vmatprep.subr.bf16.mxu0 0
      %859 = vmatpush2.bf16.msra.mxu0 0
      %860 = vmatprep.subr.bf16.mxu0 0
      %861 = vmatpush2.bf16.msra.mxu0 0
      %862 = vmatprep.subr.bf16.mxu0 0
      %863 = vmatpush2.bf16.msra.mxu0 0
      %864 = vmatprep.subr.bf16.mxu0 0
      %865 = vmatpush2.bf16.msra.mxu0 0
      %866 = vmatprep.mubr.bf16.mxu0 0
      %867 = vmatmul.mubr.bf16.gmra.mxu0 %v783
      %v868 = vpop.f32.mrf.mxu0
      %v869 = vadd.f32 %v543, %v868
      %v870 = vpop.f32.mrf.mxu0
      %v871 = vpop.f32.mrf.mxu0
      %v872 = vadd.f32 %v548, %v871
      %v873 = vpop.f32.mrf.mxu0
      %874 = vmatprep.mubr.bf16.mxu0 0
      %875 = vmatmul.mubr.bf16.gmra.mxu0 %v786
      %v876 = vpop.f32.mrf.mxu0
      %v877 = vadd.f32 %v553, %v876
      %v878 = vpop.f32.mrf.mxu0
      %v879 = vpop.f32.mrf.mxu0
      %v880 = vadd.f32 %v558, %v879
      %v881 = vpop.f32.mrf.mxu0
      %882 = vmatprep.mubr.bf16.mxu0 0
      %883 = vmatmul.mubr.bf16.gmra.mxu0 %v789
      %v884 = vpop.f32.mrf.mxu0
      %v885 = vadd.f32 %v563, %v884
      %v886 = vpop.f32.mrf.mxu0
      %v887 = vpop.f32.mrf.mxu0
      %v888 = vadd.f32 %v568, %v887
      %v889 = vpop.f32.mrf.mxu0
      %890 = vmatprep.mubr.bf16.mxu0 0
      %891 = vmatmul.mubr.bf16.gmra.mxu0 %v792
      %v892 = vpop.f32.mrf.mxu0
      %v893 = vadd.f32 %v573, %v892
      %v894 = vpop.f32.mrf.mxu0
      %v895 = vpop.f32.mrf.mxu0
      %v896 = vadd.f32 %v578, %v895
      %v897 = vpop.f32.mrf.mxu0
      %898 = vmatprep.mubr.bf16.mxu0 0
      %899 = vmatmul.mubr.bf16.gmra.mxu0 %v795
      %v900 = vpop.f32.mrf.mxu0
      %v901 = vadd.f32 %v583, %v900
      %v902 = vpop.f32.mrf.mxu0
      %v903 = vpop.f32.mrf.mxu0
      %v904 = vadd.f32 %v588, %v903
      %v905 = vpop.f32.mrf.mxu0
      %906 = vmatprep.mubr.bf16.mxu0 0
      %907 = vmatmul.mubr.bf16.gmra.mxu0 %v798
      %v908 = vpop.f32.mrf.mxu0
      %v909 = vadd.f32 %v593, %v908
      %v910 = vpop.f32.mrf.mxu0
      %v911 = vpop.f32.mrf.mxu0
      %v912 = vadd.f32 %v598, %v911
      %v913 = vpop.f32.mrf.mxu0
      %914 = vmatprep.mubr.bf16.mxu0 0
      %915 = vmatmul.mubr.bf16.gmra.mxu0 %v801
      %v916 = vpop.f32.mrf.mxu0
      %v917 = vadd.f32 %v603, %v916
      %v918 = vpop.f32.mrf.mxu0
      %v919 = vpop.f32.mrf.mxu0
      %v920 = vadd.f32 %v608, %v919
      %v921 = vpop.f32.mrf.mxu0
      %922 = vmatprep.mubr.bf16.mxu0 0
      %923 = vmatmul.mubr.bf16.gmra.mxu0 %v804
      %v924 = vpop.f32.mrf.mxu0
      %v925 = vadd.f32 %v613, %v924
      %v926 = vpop.f32.mrf.mxu0
      %v927 = vpop.f32.mrf.mxu0
      %v928 = vadd.f32 %v618, %v927
      %v929 = vpop.f32.mrf.mxu0
      %930 = vmatprep.mubr.bf16.mxu0 0
      %931 = vmatmul.mubr.bf16.gmra.mxu0 %v807
      %v932 = vpop.f32.mrf.mxu0
      %v933 = vadd.f32 %v623, %v932
      %v934 = vpop.f32.mrf.mxu0
      %v935 = vpop.f32.mrf.mxu0
      %v936 = vadd.f32 %v628, %v935
      %v937 = vpop.f32.mrf.mxu0
      %938 = vmatprep.mubr.bf16.mxu0 0
      %939 = vmatmul.mubr.bf16.gmra.mxu0 %v810
      %v940 = vpop.f32.mrf.mxu0
      %v941 = vadd.f32 %v633, %v940
      %v942 = vpop.f32.mrf.mxu0
      %v943 = vpop.f32.mrf.mxu0
      %v944 = vadd.f32 %v638, %v943
      %v945 = vpop.f32.mrf.mxu0
      %946 = vmatprep.mubr.bf16.mxu0 0
      %947 = vmatmul.mubr.bf16.gmra.mxu0 %v813
      %v948 = vpop.f32.mrf.mxu0
      %v949 = vadd.f32 %v643, %v948
      %v950 = vpop.f32.mrf.mxu0
      %v951 = vpop.f32.mrf.mxu0
      %v952 = vadd.f32 %v648, %v951
      %v953 = vpop.f32.mrf.mxu0
      %954 = vmatprep.mubr.bf16.mxu0 0
      %955 = vmatmul.mubr.bf16.gmra.mxu0 %v816
      %v956 = vpop.f32.mrf.mxu0
      %v957 = vadd.f32 %v653, %v956
      %v958 = vpop.f32.mrf.mxu0
      %v959 = vpop.f32.mrf.mxu0
      %v960 = vadd.f32 %v658, %v959
      %v961 = vpop.f32.mrf.mxu0
      %962 = vmatprep.mubr.bf16.mxu0 0
      %963 = vmatmul.mubr.bf16.gmra.mxu0 %v819
      %v964 = vpop.f32.mrf.mxu0
      %v965 = vadd.f32 %v663, %v964
      %v966 = vpop.f32.mrf.mxu0
      %v967 = vpop.f32.mrf.mxu0
      %v968 = vadd.f32 %v668, %v967
      %v969 = vpop.f32.mrf.mxu0
      %970 = vmatprep.mubr.bf16.mxu0 0
      %971 = vmatmul.mubr.bf16.gmra.mxu0 %v822
      %v972 = vpop.f32.mrf.mxu0
      %v973 = vadd.f32 %v673, %v972
      %v974 = vpop.f32.mrf.mxu0
      %v975 = vpop.f32.mrf.mxu0
      %v976 = vadd.f32 %v678, %v975
      %v977 = vpop.f32.mrf.mxu0
      %978 = vmatprep.mubr.bf16.mxu0 0
      %979 = vmatmul.mubr.bf16.gmra.mxu0 %v825
      %v980 = vpop.f32.mrf.mxu0
      %v981 = vadd.f32 %v683, %v980
      %v982 = vpop.f32.mrf.mxu0
      %v983 = vpop.f32.mrf.mxu0
      %v984 = vadd.f32 %v688, %v983
      %v985 = vpop.f32.mrf.mxu0
      %986 = vmatprep.mubr.bf16.mxu0 0
      %987 = vmatmul.mubr.bf16.gmra.mxu0 %v828
      %v988 = vpop.f32.mrf.mxu0
      %v989 = vadd.f32 %v693, %v988
      %v990 = vpop.f32.mrf.mxu0
      %v991 = vpop.f32.mrf.mxu0
      %v992 = vadd.f32 %v698, %v991
      %v993 = vpop.f32.mrf.mxu0
      %994 = vdwg.mxu0
      %v995 = vld [vmem:[%s4] sm:$0x1]
      %v997 = vlaneseq
      %v998 = vshrl.u32 %v997, 7
      %v999 = vsub.s32 0, %v998
      %v1000 = vrot.slane %v995, %v999
      %v1002 = vadd.f32 %v869, %v1000
      %v1003 = vadd.f32 %v872, %v1000
      %v1004 = vadd.f32 %v877, %v1000
      %v1005 = vadd.f32 %v880, %v1000
      %v1006 = vadd.f32 %v885, %v1000
      %v1007 = vadd.f32 %v888, %v1000
      %v1008 = vadd.f32 %v893, %v1000
      %v1009 = vadd.f32 %v896, %v1000
      %v1010 = vadd.f32 %v901, %v1000
      %v1011 = vadd.f32 %v904, %v1000
      %v1012 = vadd.f32 %v909, %v1000
      %v1013 = vadd.f32 %v912, %v1000
      %v1014 = vadd.f32 %v917, %v1000
      %v1015 = vadd.f32 %v920, %v1000
      %v1016 = vadd.f32 %v925, %v1000
      %v1017 = vadd.f32 %v928, %v1000
      %v1018 = vadd.f32 %v933, %v1000
      %v1019 = vadd.f32 %v936, %v1000
      %v1020 = vadd.f32 %v941, %v1000
      %v1021 = vadd.f32 %v944, %v1000
      %v1022 = vadd.f32 %v949, %v1000
      %v1023 = vadd.f32 %v952, %v1000
      %v1024 = vadd.f32 %v957, %v1000
      %v1025 = vadd.f32 %v960, %v1000
      %v1026 = vadd.f32 %v965, %v1000
      %v1027 = vadd.f32 %v968, %v1000
      %v1028 = vadd.f32 %v973, %v1000
      %v1029 = vadd.f32 %v976, %v1000
      %v1030 = vadd.f32 %v981, %v1000
      %v1031 = vadd.f32 %v984, %v1000
      %v1032 = vadd.f32 %v989, %v1000
      %v1033 = vadd.f32 %v992, %v1000
      %v1034 = vmax.f32 %v1002, 0.0
      %v1035 = vmax.f32 %v1003, 0.0
      %v1036 = vmax.f32 %v1004, 0.0
      %v1037 = vmax.f32 %v1005, 0.0
      %v1038 = vmax.f32 %v1006, 0.0
      %v1039 = vmax.f32 %v1007, 0.0
      %v1040 = vmax.f32 %v1008, 0.0
      %v1041 = vmax.f32 %v1009, 0.0
      %v1042 = vmax.f32 %v1010, 0.0
      %v1043 = vmax.f32 %v1011, 0.0
      %v1044 = vmax.f32 %v1012, 0.0
      %v1045 = vmax.f32 %v1013, 0.0
      %v1046 = vmax.f32 %v1014, 0.0
      %v1047 = vmax.f32 %v1015, 0.0
      %v1048 = vmax.f32 %v1016, 0.0
      %v1049 = vmax.f32 %v1017, 0.0
      %v1050 = vmax.f32 %v1018, 0.0
      %v1051 = vmax.f32 %v1019, 0.0
      %v1052 = vmax.f32 %v1020, 0.0
      %v1053 = vmax.f32 %v1021, 0.0
      %v1054 = vmax.f32 %v1022, 0.0
      %v1055 = vmax.f32 %v1023, 0.0
      %v1056 = vmax.f32 %v1024, 0.0
      %v1057 = vmax.f32 %v1025, 0.0
      %v1058 = vmax.f32 %v1026, 0.0
      %v1059 = vmax.f32 %v1027, 0.0
      %v1060 = vmax.f32 %v1028, 0.0
      %v1061 = vmax.f32 %v1029, 0.0
      %v1062 = vmax.f32 %v1030, 0.0
      %v1063 = vmax.f32 %v1031, 0.0
      %v1064 = vmax.f32 %v1032, 0.0
      %v1065 = vmax.f32 %v1033, 0.0
      %v1066 = vpack.c.bf16 %v1035, %v1034
      %v1067 = vpack.c.bf16 %v1037, %v1036
      %v1068 = vpack.c.bf16 %v1039, %v1038
      %v1069 = vpack.c.bf16 %v1041, %v1040
      %v1070 = vpack.c.bf16 %v1043, %v1042
      %v1071 = vpack.c.bf16 %v1045, %v1044
      %v1072 = vpack.c.bf16 %v1047, %v1046
      %v1073 = vpack.c.bf16 %v1049, %v1048
      %v1074 = vpack.c.bf16 %v1051, %v1050
      %v1075 = vpack.c.bf16 %v1053, %v1052
      %v1076 = vpack.c.bf16 %v1055, %v1054
      %v1077 = vpack.c.bf16 %v1057, %v1056
      %v1078 = vpack.c.bf16 %v1059, %v1058
      %v1079 = vpack.c.bf16 %v1061, %v1060
      %v1080 = vpack.c.bf16 %v1063, %v1062
      %v1081 = vpack.c.bf16 %v1065, %v1064
      %v1098 = vunpack.c.l.b16 %v1066
      %v1099 = vunpack.c.h.b16 %v1066
      %v1100 = vunpack.c.l.b16 %v1067
      %v1101 = vunpack.c.h.b16 %v1067
      %v1102 = vunpack.c.l.b16 %v1068
      %v1103 = vunpack.c.h.b16 %v1068
      %v1104 = vunpack.c.l.b16 %v1069
      %v1105 = vunpack.c.h.b16 %v1069
      %v1106 = vunpack.c.l.b16 %v1070
      %v1107 = vunpack.c.h.b16 %v1070
      %v1108 = vunpack.c.l.b16 %v1071
      %v1109 = vunpack.c.h.b16 %v1071
      %v1110 = vunpack.c.l.b16 %v1072
      %v1111 = vunpack.c.h.b16 %v1072
      %v1112 = vunpack.c.l.b16 %v1073
      %v1113 = vunpack.c.h.b16 %v1073
      %v1114 = vunpack.c.l.b16 %v1074
      %v1115 = vunpack.c.h.b16 %v1074
      %v1116 = vunpack.c.l.b16 %v1075
      %v1117 = vunpack.c.h.b16 %v1075
      %v1118 = vunpack.c.l.b16 %v1076
      %v1119 = vunpack.c.h.b16 %v1076
      %v1120 = vunpack.c.l.b16 %v1077
      %v1121 = vunpack.c.h.b16 %v1077
      %v1122 = vunpack.c.l.b16 %v1078
      %v1123 = vunpack.c.h.b16 %v1078
      %v1124 = vunpack.c.l.b16 %v1079
      %v1125 = vunpack.c.h.b16 %v1079
      %v1126 = vunpack.c.l.b16 %v1080
      %v1127 = vunpack.c.h.b16 %v1080
      %v1128 = vunpack.c.l.b16 %v1081
      %v1129 = vunpack.c.h.b16 %v1081
      %v1130 = vpack.c.b16 %v1098, %v1098
      %v1131 = vpack.c.b16 %v1099, %v1099
      %v1132 = vpack.c.b16 %v1100, %v1100
      %v1133 = vpack.c.b16 %v1101, %v1101
      %v1134 = vpack.c.b16 %v1102, %v1102
      %v1135 = vpack.c.b16 %v1103, %v1103
      %v1136 = vpack.c.b16 %v1104, %v1104
      %v1137 = vpack.c.b16 %v1105, %v1105
      %v1138 = vpack.c.b16 %v1106, %v1106
      %v1139 = vpack.c.b16 %v1107, %v1107
      %v1140 = vpack.c.b16 %v1108, %v1108
      %v1141 = vpack.c.b16 %v1109, %v1109
      %v1142 = vpack.c.b16 %v1110, %v1110
      %v1143 = vpack.c.b16 %v1111, %v1111
      %v1144 = vpack.c.b16 %v1112, %v1112
      %v1145 = vpack.c.b16 %v1113, %v1113
      %v1146 = vpack.c.b16 %v1114, %v1114
      %v1147 = vpack.c.b16 %v1115, %v1115
      %v1148 = vpack.c.b16 %v1116, %v1116
      %v1149 = vpack.c.b16 %v1117, %v1117
      %v1150 = vpack.c.b16 %v1118, %v1118
      %v1151 = vpack.c.b16 %v1119, %v1119
      %v1152 = vpack.c.b16 %v1120, %v1120
      %v1153 = vpack.c.b16 %v1121, %v1121
      %v1154 = vpack.c.b16 %v1122, %v1122
      %v1155 = vpack.c.b16 %v1123, %v1123
      %v1156 = vpack.c.b16 %v1124, %v1124
      %v1157 = vpack.c.b16 %v1125, %v1125
      %v1158 = vpack.c.b16 %v1126, %v1126
      %v1159 = vpack.c.b16 %v1127, %v1127
      %v1160 = vpack.c.b16 %v1128, %v1128
      %v1161 = vpack.c.b16 %v1129, %v1129
      %1194 = vst [vmem:[%s304] sm:$0xf] %v1130
      %1195 = vst [vmem:[%s304 + $0x4] sm:$0xf] %v1131
      %1196 = vst [vmem:[%s304 + $0x8] sm:$0xf] %v1132
      %1197 = vst [vmem:[%s304 + $0xc] sm:$0xf] %v1133
      %1198 = vst [vmem:[%s304 + $0x10] sm:$0xf] %v1134
      %1199 = vst [vmem:[%s304 + $0x14] sm:$0xf] %v1135
      %1200 = vst [vmem:[%s304 + $0x18] sm:$0xf] %v1136
      %1201 = vst [vmem:[%s304 + $0x1c] sm:$0xf] %v1137
      %1202 = vst [vmem:[%s304 + $0x20] sm:$0xf] %v1138
      %1203 = vst [vmem:[%s304 + $0x24] sm:$0xf] %v1139
      %1204 = vst [vmem:[%s304 + $0x28] sm:$0xf] %v1140
      %1205 = vst [vmem:[%s304 + $0x2c] sm:$0xf] %v1141
      %1206 = vst [vmem:[%s304 + $0x30] sm:$0xf] %v1142
      %1207 = vst [vmem:[%s304 + $0x34] sm:$0xf] %v1143
      %1208 = vst [vmem:[%s304 + $0x38] sm:$0xf] %v1144
      %1209 = vst [vmem:[%s304 + $0x3c] sm:$0xf] %v1145
      %1210 = vst [vmem:[%s304 + $0x40] sm:$0xf] %v1146
      %1211 = vst [vmem:[%s304 + $0x44] sm:$0xf] %v1147
      %1212 = vst [vmem:[%s304 + $0x48] sm:$0xf] %v1148
      %1213 = vst [vmem:[%s304 + $0x4c] sm:$0xf] %v1149
      %1214 = vst [vmem:[%s304 + $0x50] sm:$0xf] %v1150
      %1215 = vst [vmem:[%s304 + $0x54] sm:$0xf] %v1151
      %1216 = vst [vmem:[%s304 + $0x58] sm:$0xf] %v1152
      %1217 = vst [vmem:[%s304 + $0x5c] sm:$0xf] %v1153
      %1218 = vst [vmem:[%s304 + $0x60] sm:$0xf] %v1154
      %1219 = vst [vmem:[%s304 + $0x64] sm:$0xf] %v1155
      %1220 = vst [vmem:[%s304 + $0x68] sm:$0xf] %v1156
      %1221 = vst [vmem:[%s304 + $0x6c] sm:$0xf] %v1157
      %1222 = vst [vmem:[%s304 + $0x70] sm:$0xf] %v1158
      %1223 = vst [vmem:[%s304 + $0x74] sm:$0xf] %v1159
      %1224 = vst [vmem:[%s304 + $0x78] sm:$0xf] %v1160
      %1225 = vst [vmem:[%s304 + $0x7c] sm:$0xf] %v1161
      %s1226 = smul.u32 32, %s21
      %p1227 = scmp.lt.s32.totalorder %s20, 1
      %s1228 = scalar_select %p1227, %s20, 1
      %p1229 = scmp.lt.s32.totalorder %s1226, 31
      %s1230 = scalar_select %p1229, %s1226, 31
      %s1231 = smul.addr %s1228, 32
      %s1232 = sadd.s32 %s1230, %s1231
      %s1233 = smul.addr %s1232, 4
      %s1234 = scalar_lea.vmem %s5, %s1233
      // Predicated region
      $region41: #{spm_forward.1} parent=39 // pred_check
        %p1235 = pneg %p170
      $region42: #{spm_forward.1} parent=39 // pred_check_branch
        %1237 = sbr.rel (%p1235) target = $region44
      $region43: #{spm_forward.1} parent=39 // pred_region
        %s1238 = smul.u32 32, %s21
      $region44: #{spm_forward.1} parent=39 // pred_fallthru
        _
    $region40: #{spm_forward.1} parent=5 // pred_fallthru
      _
    %p1239 = scmp.le.s32.totalorder 2, %s11
    // Predicated region
    $region45: #{spm_forward.1} parent=5 // pred_check
      %p1240 = pneg %p1239
    $region46: #{spm_forward.1} parent=5 // pred_check_branch
      %1242 = sbr.rel (%p1240) target = $region48
    $region47: #{spm_forward.1} parent=5 // pred_region
      %s1243 = ssub.s32 %s11, 2
      // Predicated region
      $region49: #{spm_forward.1} parent=47 // pred_check
        %p1244 = pneg %p176
      $region50: #{spm_forward.1} parent=47 // pred_check_branch
        %1246 = sbr.rel (%p1244) target = $region52
      $region51: #{spm_forward.1} parent=47 // pred_region
        %s1247 = smul.u32 32, %s23
        %p1248 = scmp.lt.s32.totalorder %s22, 1
        %s1249 = scalar_select %p1248, %s22, 1
        %p1250 = scmp.lt.s32.totalorder %s1247, 31
        %s1251 = scalar_select %p1250, %s1247, 31
        %s1252 = smul.addr %s1249, 32
        %s1253 = sadd.s32 %s1251, %s1252
        %s1254 = smul.addr %s1253, 4
        %s1255 = scalar_lea.vmem %s5, %s1254
      $region52: #{spm_forward.1} parent=47 // pred_fallthru
        _
    $region48: #{spm_forward.1} parent=5 // pred_fallthru
      _
  $region6: #{spm_forward.1} parent=0 // loop_footer
    %s15 = sadd.s32 1, %s11
  $region7: #{spm_forward.1} parent=0 // loop_footer_branch
    %10 = sbr.rel target = $region3
  $region8: #{spm_forward.1} parent=0 // loop_exit
    _

</llo_original>
